<compile_context>
chip_gen: v7x
topology: tpu7x:2x2x1
jax: 0.10.0
libtpu: 0.0.40
codegen_flags: <defaults>
</compile_context>

<pallas_src>
import jax
import jax.numpy as jnp
from jax.experimental import pallas as pl
from jax.experimental.pallas import tpu as pltpu


# --------------------------------------------------------------------------- #
# helpers
# --------------------------------------------------------------------------- #
def _round_up(x, m):
    return ((x + m - 1) // m) * m


def _largest_divisor_tile(dim, candidates):
    """Largest 128-aligned candidate that divides `dim`; else the full dim."""
    for c in candidates:
        if c and c % 128 == 0 and 0 < c <= dim and dim % c == 0:
            return c
    return dim  # full-dim block is always a legal BlockSpec shape


def _sublane_multiple(dtype):
    itemsize = jnp.dtype(dtype).itemsize
    if itemsize >= 4:
        return 8
    if itemsize == 2:
        return 16
    return 32


def _vmem_budget_bytes():
    """~85% of physical VMEM (54 MiB on v7x, ~108 MiB on v5e/v6e)."""
    try:
        cap = int(pltpu.get_tpu_info().vmem_capacity_bytes)
    except Exception:
        cap = 64 << 20
    return max(int(cap * 0.85), 32 << 20)


def _mish_from_f32(y, approx_recip, out_dtype):
    # mish(y) = y * tanh(softplus(y)).  With t = exp(y):
    #   tanh(log(1+t)) = t(t+2) / (t(t+2) + 2)
    # Clamp y at 20 so exp never overflows (tanh(softplus(20)) == 1 in f32).
    t = jnp.exp(jnp.minimum(y, 20.0))
    num = t * (t + 2.0)
    den = num + 2.0
    if approx_recip:
        tanh_sp = num * pl.reciprocal(den, approx=True)
    else:
        tanh_sp = num / den
    return (y * tanh_sp).astype(out_dtype)


# --------------------------------------------------------------------------- #
# kernels
# --------------------------------------------------------------------------- #
def _make_resident_kernel(approx_recip):
    """Single-pass kernel: W and bias fully VMEM-resident, no K grid axis."""

    def kernel(x_ref, w_ref, b_ref, o_ref):
        y = jnp.dot(x_ref[...], w_ref[...], preferred_element_type=jnp.float32)
        y = y + b_ref[...]
        o_ref[...] = _mish_from_f32(y, approx_recip, o_ref.dtype)

    return kernel


def _make_tiled_kernel(approx_recip, acc_in_out):
    """Tiled (M,N,K) kernel; accumulates in o_ref when the output is f32."""

    if acc_in_out:

        def kernel(x_ref, w_ref, b_ref, o_ref):
            k = pl.program_id(2)
            part = jnp.dot(x_ref[...], w_ref[...],
                           preferred_element_type=jnp.float32)

            @pl.when(k == 0)
            def _():
                o_ref[...] = part

            @pl.when(k != 0)
            def _():
                o_ref[...] += part

            @pl.when(k == pl.num_programs(2) - 1)
            def _():
                y = o_ref[...] + b_ref[...]
                o_ref[...] = _mish_from_f32(y, approx_recip, o_ref.dtype)

        return kernel

    def kernel(x_ref, w_ref, b_ref, o_ref, acc_ref):
        k = pl.program_id(2)

        @pl.when(k == 0)
        def _():
            acc_ref[...] = jnp.zeros_like(acc_ref)

        acc_ref[...] += jnp.dot(x_ref[...], w_ref[...],
                                preferred_element_type=jnp.float32)

        @pl.when(k == pl.num_programs(2) - 1)
        def _():
            y = acc_ref[...] + b_ref[...]
            o_ref[...] = _mish_from_f32(y, approx_recip, o_ref.dtype)

    return kernel


# --------------------------------------------------------------------------- #
# wrapper
# --------------------------------------------------------------------------- #
def linear_mish(x2d, w, b, *, tm=512, tn=512, tk=512,
                approx_recip=True, out_dtype=None, weight_resident=None):
    """Fused y = mish(x2d @ w + b).

    x2d: (M, E), w: (E, F) already transposed so y = x @ w, b: (F,).
    """
    M, K = x2d.shape
    K2, N = w.shape
    assert K == K2 and b.shape == (N,)
    out_dtype = jnp.dtype(out_dtype or x2d.dtype)

    in_dtype = x2d.dtype
    if w.dtype != in_dtype:
        w = w.astype(in_dtype)

    itin = jnp.dtype(in_dtype).itemsize
    itout = out_dtype.itemsize
    sub = _sublane_multiple(in_dtype)
    budget = _vmem_budget_bytes()

    b2d = b.reshape(1, N).astype(jnp.float32)
    weight_bytes = K * N * itin

    if weight_resident is None:
        # Resident W when the (double-buffered) weight comfortably fits VMEM
        # even on v7x's 64 MiB.
        weight_resident = (weight_bytes <= (16 << 20)
                           and 2 * weight_bytes <= budget // 2)

    bytes_accessed = (M * K * itin + K * N * itin + N * 4 + M * N * itout)
    cost = pl.CostEstimate(
        flops=2 * M * K * N,
        transcendentals=2 * M * N,          # exp + reciprocal per output elem
        bytes_accessed=bytes_accessed,
    )

    if weight_resident:
        # ---- single streaming pass over X / Y, W read from HBM exactly once.
        tm_cap = _round_up(M, sub)
        tm_half = max(_round_up((M + 1) // 2, sub), sub)  # >=2 blocks (v7x 2 TC)
        tm_eff = min(_round_up(tm, sub), tm_cap, tm_half)

        def vmem_need(tm_):
            return (2 * weight_bytes            # weight (double-buffer alloc)
                    + 2 * tm_ * K * itin        # x tiles
                    + 2 * tm_ * N * itout       # out tiles
                    + 2 * N * 4)                # bias

        while tm_eff > sub and vmem_need(tm_eff) > budget:
            tm_eff = max(_round_up(tm_eff // 2, sub), sub)

        grid = (pl.cdiv(M, tm_eff),)
        vmem_limit = int(min(max(vmem_need(tm_eff) + (4 << 20), 32 << 20),
                             budget))

        return pl.pallas_call(
            _make_resident_kernel(approx_recip),
            out_shape=jax.ShapeDtypeStruct((M, N), out_dtype),
            grid_spec=pltpu.PrefetchScalarGridSpec(
                num_scalar_prefetch=0,
                grid=grid,
                in_specs=[
                    pl.BlockSpec((tm_eff, K), lambda i: (i, 0)),
                    pl.BlockSpec((K, N), lambda i: (0, 0)),   # fetched once
                    pl.BlockSpec((1, N), lambda i: (0, 0)),
                ],
                out_specs=pl.BlockSpec((tm_eff, N), lambda i: (i, 0)),
            ),
            compiler_params=pltpu.CompilerParams(
                dimension_semantics=("parallel",),
                vmem_limit_bytes=vmem_limit,
            ),
            cost_estimate=cost,
        )(x2d, w, b2d)

    # ---- tiled (M, N, K) path -------------------------------------------- #
    # TODO(synk): if E is not 128-aligned, pad W/bias/output to 128 lanes
    # instead of the full-dim fallback to keep stores lane-dense.
    tn_eff = _largest_divisor_tile(N, (tn, 512, 256, 128))
    tk_eff = _largest_divisor_tile(K, (tk, 512, 256, 128))
    tm_eff = min(_round_up(tm, sub), _round_up(M, sub))

    acc_in_out = out_dtype == jnp.dtype(jnp.float32)

    def vmem_need(tm_):
        v = (2 * (tm_ * tk_eff + tk_eff * tn_eff) * itin
             + 2 * tm_ * tn_eff * itout
             + 2 * tn_eff * 4)
        if not acc_in_out:
            v += tm_ * tn_eff * 4
        return v

    while tm_eff > sub and vmem_need(tm_eff) > budget:
        tm_eff = max(_round_up(tm_eff // 2, sub), sub)

    grid = (pl.cdiv(M, tm_eff), N // tn_eff, K // tk_eff)
    vmem_limit = int(min(max(vmem_need(tm_eff) + (4 << 20), 32 << 20), budget))

    scratch = [] if acc_in_out else [pltpu.VMEM((tm_eff, tn_eff), jnp.float32)]

    return pl.pallas_call(
        _make_tiled_kernel(approx_recip, acc_in_out),
        out_shape=jax.ShapeDtypeStruct((M, N), out_dtype),
        grid_spec=pltpu.PrefetchScalarGridSpec(
            num_scalar_prefetch=0,
            grid=grid,
            in_specs=[
                pl.BlockSpec((tm_eff, tk_eff), lambda i, j, k: (i, k)),
                pl.BlockSpec((tk_eff, tn_eff), lambda i, j, k: (k, j)),
                pl.BlockSpec((1, tn_eff), lambda i, j, k: (0, j)),
            ],
            out_specs=pl.BlockSpec((tm_eff, tn_eff), lambda i, j, k: (i, j)),
            scratch_shapes=scratch,
        ),
        compiler_params=pltpu.CompilerParams(
            dimension_semantics=("parallel", "parallel", "arbitrary"),
            vmem_limit_bytes=vmem_limit,
        ),
        cost_estimate=cost,
    )(x2d, w, b2d)


# --------------------------------------------------------------------------- #
# model
# --------------------------------------------------------------------------- #
class ModelPallas:
    """JAX/Pallas port of the defined portion of Model.forward.

    Applies input_transform (Linear) followed by the mish-style activation
    x * tanh(softplus(x)) in a single fused Pallas TPU kernel.  Dropout is
    identity at inference time.  Default production path uses bf16 MXU
    operands (stored at init) with f32 accumulation and the EUP approx
    reciprocal in the mish epilogue.
    """

    def __init__(self, emb_dim, num_layers, heads=8, key=None,
                 compute_dtype=jnp.bfloat16, approx_recip=True,
                 out_dtype=jnp.float32):
        self.emb_dim = emb_dim
        self.num_layers = num_layers
        self.heads = heads
        self.compute_dtype = jnp.dtype(compute_dtype)
        self.approx_recip = approx_recip
        self.out_dtype = jnp.dtype(out_dtype)
        if key is None:
            key = jax.random.PRNGKey(0)
        k_w, k_b = jax.random.split(key)
        bound = 1.0 / (emb_dim ** 0.5)
        # PyTorch Linear weight is (out, in); y = x @ W.T + b.  Store the
        # transpose (in compute dtype, so no per-forward cast pass) so the
        # kernel can do a plain x @ w.
        self.w = jax.random.uniform(
            k_w, (emb_dim, emb_dim), jnp.float32, -bound, bound
        ).astype(self.compute_dtype)
        self.b = jax.random.uniform(
            k_b, (emb_dim,), jnp.float32, -bound, bound
        )

    def __call__(self, x, positions):
        # x: (B, S, E); positions: (B, S) (unused by the defined hot path).
        B, S, E = x.shape
        x2d = x.reshape(B * S, E)
        if x2d.dtype != self.compute_dtype:
            x2d = x2d.astype(self.compute_dtype)
        y2d = linear_mish(
            x2d, self.w, self.b,
            approx_recip=self.approx_recip,
            out_dtype=self.out_dtype,
        )
        y = y2d.reshape(B, S, E)
        # TODO(synk): loop over ReadformerBlock / TransformerBlock layers
        # (definitions not provided in the reference source).
        return y


def _reference(x, w, b):
    y = jnp.einsum("bse,ef->bsf", x.astype(jnp.float32),
                   w.astype(jnp.float32)) + b
    sp = jnp.logaddexp(y, 0.0)
    return y * jnp.tanh(sp)


# --------------------------------------------------------------------------- #
# tests
# --------------------------------------------------------------------------- #
if __name__ == "__main__":
    key = jax.random.PRNGKey(0)
    k_x, k_p, k_m, k_w2 = jax.random.split(key, 4)

    batch, seq, emb_dim = 2, 8, 32
    x = jax.random.normal(k_x, (batch, seq, emb_dim), jnp.float32)
    positions = jax.random.randint(k_p, (batch, seq), 0, seq)

    # 1) Exact path (f32 operands, exact reciprocal, resident-W regime):
    #    tight correctness check against the pure-JAX reference.
    model = ModelPallas(emb_dim=emb_dim, num_layers=2, heads=8, key=k_m,
                        compute_dtype=jnp.float32, approx_recip=False)
    out = jax.block_until_ready(model(x, positions))
    ref = _reference(x, model.w, model.b)
    assert out.shape == (batch, seq, emb_dim)
    assert jnp.allclose(out, ref, atol=1e-5, rtol=1e-5)

    # 2) Forced tiled (M,N,K) path with a partial last M block (no pad/slice).
    x2d = x.reshape(batch * seq, emb_dim)
    out_tiled = jax.block_until_ready(linear_mish(
        x2d[:13], model.w, model.b, tm=8, tn=32, tk=32,
        approx_recip=False, out_dtype=jnp.float32, weight_resident=False))
    y13 = x2d[:13] @ model.w + model.b
    ref13 = y13 * jnp.tanh(jnp.logaddexp(y13, 0.0))
    assert out_tiled.shape == (13, emb_dim)
    assert jnp.allclose(out_tiled, ref13, atol=1e-5, rtol=1e-5)

    # 3) Tiled path with a real K reduction (2 K steps) accumulating in o_ref.
    M2, K2, N2 = 16, 256, 128
    xb = jax.random.normal(jax.random.PRNGKey(1), (M2, K2), jnp.float32)
    wb = 0.05 * jax.random.normal(k_w2, (K2, N2), jnp.float32)
    bb = 0.05 * jax.random.normal(jax.random.PRNGKey(2), (N2,), jnp.float32)
    out_k = jax.block_until_ready(linear_mish(
        xb, wb, bb, tm=8, tn=128, tk=128,
        approx_recip=False, out_dtype=jnp.float32, weight_resident=False))
    yk = xb @ wb + bb
    refk = yk * jnp.tanh(jnp.logaddexp(yk, 0.0))
    assert jnp.allclose(out_k, refk, atol=1e-5, rtol=1e-5)

    # 3b) Same, bf16 output -> exercises the f32 scratch-accumulator variant.
    out_kb = jax.block_until_ready(linear_mish(
        xb, wb, bb, tm=8, tn=128, tk=128,
        approx_recip=True, out_dtype=jnp.bfloat16, weight_resident=False))
    assert out_kb.dtype == jnp.bfloat16
    assert float(jnp.max(jnp.abs(out_kb.astype(jnp.float32) - refk))) < 5e-2

    # 4) Production default: bf16 MXU operands (stored at init), approx EUP
    #    reciprocal, resident-W single pass.  Loose numerical check.
    model_fast = ModelPallas(emb_dim=emb_dim, num_layers=2, heads=8, key=k_m)
    out_fast = jax.block_until_ready(model_fast(x, positions))
    assert out_fast.shape == (batch, seq, emb_dim)
    assert bool(jnp.isfinite(out_fast).all())
    assert float(jnp.max(jnp.abs(out_fast - ref))) < 5e-2

    print("KERNEL_OK")
</pallas_src>

<mosaic_0001>
module attributes {stable_mosaic.version = 11 : i64} {
  func.func @kernel(%arg0: i32, %arg1: memref<8x32xf32, #tpu.memory_space<vmem>>, %arg2: memref<32x32xf32, #tpu.memory_space<vmem>>, %arg3: memref<1x32xf32, #tpu.memory_space<vmem>>, %arg4: memref<8x32xf32, #tpu.memory_space<vmem>>) attributes {dimension_semantics = [#tpu.dimension_semantics<parallel>], iteration_bounds = array<i64: 2>, scalar_prefetch = 0 : i64, scratch_operands = 0 : i64, tpu.core_type = #tpu.core_type<tc>, window_params = [{transform_indices = @transform_0, window_bounds = array<i64: 8, 32>}, {pipeline_mode = #tpu.pipeline_mode<synchronous>, transform_indices = @transform_1, window_bounds = array<i64: 32, 32>}, {pipeline_mode = #tpu.pipeline_mode<synchronous>, transform_indices = @transform_2, window_bounds = array<i64: 1, 32>}, {transform_indices = @transform_3, window_bounds = array<i64: 8, 32>}]} {
    %c0 = arith.constant 0 : index
    %c0_0 = arith.constant 0 : index
    %0 = vector.load %arg1[%c0, %c0_0] : memref<8x32xf32, #tpu.memory_space<vmem>>, vector<8x32xf32>
    %c0_1 = arith.constant 0 : index
    %c0_2 = arith.constant 0 : index
    %1 = vector.load %arg2[%c0_1, %c0_2] : memref<32x32xf32, #tpu.memory_space<vmem>>, vector<32x32xf32>
    %cst = arith.constant dense<0.000000e+00> : vector<8x32xf32>
    %2 = tpu.matmul %0, %1, %cst {dimension_numbers = #tpu.dot_dimension_numbers<[1], [0], [0], [1], [0, 0, 1, 1], [], []>} : vector<8x32xf32>, vector<32x32xf32>, vector<8x32xf32> -> vector<8x32xf32>
    %c0_3 = arith.constant 0 : index
    %c0_4 = arith.constant 0 : index
    %3 = vector.load %arg3[%c0_3, %c0_4] : memref<1x32xf32, #tpu.memory_space<vmem>>, vector<1x32xf32>
    %4 = vector.broadcast %3 : vector<1x32xf32> to vector<8x32xf32>
    %5 = arith.addf %2, %4 : vector<8x32xf32>
    %cst_5 = arith.constant 2.000000e+01 : f32
    %6 = vector.broadcast %cst_5 : f32 to vector<8x32xf32>
    %7 = arith.minimumf %5, %6 : vector<8x32xf32>
    %8 = math.exp %7 : vector<8x32xf32>
    %cst_6 = arith.constant 2.000000e+00 : f32
    %9 = vector.broadcast %cst_6 : f32 to vector<8x32xf32>
    %10 = arith.addf %8, %9 : vector<8x32xf32>
    %11 = arith.mulf %8, %10 : vector<8x32xf32>
    %cst_7 = arith.constant 2.000000e+00 : f32
    %12 = vector.broadcast %cst_7 : f32 to vector<8x32xf32>
    %13 = arith.addf %11, %12 : vector<8x32xf32>
    %14 = arith.divf %11, %13 : vector<8x32xf32>
    %15 = arith.mulf %5, %14 : vector<8x32xf32>
    %c0_8 = arith.constant 0 : index
    %c0_9 = arith.constant 0 : index
    %16 = vector.load %arg4[%c0_8, %c0_9] : memref<8x32xf32, #tpu.memory_space<vmem>>, vector<8x32xf32>
    tpu.vector_store %arg4[%c0_8, %c0_9], %15 {strides = array<i32>} : memref<8x32xf32, #tpu.memory_space<vmem>>, vector<8x32xf32>,
    return
  }
  func.func @transform_0(%arg0: i32) -> (i32, i32) {
    %c0_i32 = arith.constant 0 : i32
    %c0_i32_0 = arith.constant 0 : i32
    return %arg0, %c0_i32 : i32, i32
  }
  func.func @transform_1(%arg0: i32) -> (i32, i32) {
    %c0_i32 = arith.constant 0 : i32
    %c0_i32_0 = arith.constant 0 : i32
    %c0_i32_1 = arith.constant 0 : i32
    return %c0_i32, %c0_i32_0 : i32, i32
  }
  func.func @transform_2(%arg0: i32) -> (i32, i32) {
    %c0_i32 = arith.constant 0 : i32
    %c0_i32_0 = arith.constant 0 : i32
    %c0_i32_1 = arith.constant 0 : i32
    return %c0_i32, %c0_i32_0 : i32, i32
  }
  func.func @transform_3(%arg0: i32) -> (i32, i32) {
    %c0_i32 = arith.constant 0 : i32
    %c0_i32_0 = arith.constant 0 : i32
    return %arg0, %c0_i32 : i32, i32
  }
}

</mosaic_0001>

<llo_original>
// kernel: tpu_custom_call.1
$region0: #{tpu_custom_call.1}
  #allocation0 [shape = 'u32[]', space=smem, size = 0x4, offset = 0x4, fixed_abs, tag = 'smem constant byte address 0x4 - core index']
  #allocation1 [shape = 'u32[144,128]{1,0:T(1,128)}', space=vmem, size = 0x12000, scoped, tag = 'internal scratch']
  %s0 = inlined_call_operand.hbm [shape: f32[16,32], index: 0, kind: input, shape index: {}]
  %s1 = inlined_call_operand.hbm [shape: f32[32,32], index: 1, kind: input, shape index: {}]
  %s2 = inlined_call_operand.vmem [shape: f32[1,32], index: 2, kind: input, shape index: {}]
  %s3 = inlined_call_operand.hbm [shape: f32[16,32], index: 3, kind: output, shape index: {}]
  %s4 = sld [smem:[#allocation0]]
  $region53: #{tpu_custom_call.1} parent=0
    _
  %s6 = ssub.s32 1, %s4
  %s7 = scalar_select 0, %s6, %s4
  $region1: #{tpu_custom_call.1} parent=0
    #allocation2 [shape = 'u8[8192]{0}', space=vmem, size = 0x2000, scoped, tag = 'input window, operand 0']
    #allocation3 [shape = 's32[2]{0}', space=sflag, size = 0x8, scoped, tag = 'scoped memory for tpu_custom_call.1']
    #allocation4 [shape = 's32[2]{0}', space=sflag, size = 0x8, scoped, tag = 'scoped memory for tpu_custom_call.1']
    #allocation5 [shape = 'u8[16384]{0}', space=vmem, size = 0x4000, scoped, tag = 'input window, operand 1, single buffered']
    #allocation6 [shape = 's32[1]{0}', space=sflag, size = 0x4, scoped, tag = 'scoped memory for tpu_custom_call.1']
    #allocation7 [shape = 'u8[8192]{0}', space=vmem, size = 0x2000, scoped, tag = 'output window, operand 0']
    %8 = vsyncpa [#allocation3], 0
    %s9 = scalar_lea.sflag [#allocation3], 1
    %10 = vsyncpa %s9, 0
    %11 = vsyncpa [#allocation6], 0
    %12 = vsyncpa [#allocation4], 0
    %s13 = scalar_lea.sflag [#allocation4], 1
    %14 = vsyncpa %s13, 0
    loop: start=0, step=1, limit=4
    $region2: #{tpu_custom_call.1} parent=1 // loop_pre_header
      _
    $region3: #{tpu_custom_call.1} parent=1 // loop_header
      %s16 = sphi 0, %s20
      %p17 = scmp.ge.s32.totalorder %s16, 4
      %s26 = sphi 0, %s28
      %s29 = sphi 0, %s26
      %s30 = sphi 0, %s29
      %s46 = sphi 0, %s30
      %s50 = sphi 0, %s50
      %s52 = sphi 0, %s50
      %s53 = sphi 0, %s52
      %s67 = sphi 0, %s53
      %s71 = sphi 0, %s71
      %s73 = sphi 0, %s71
      %s74 = sphi 0, %s73
      %s88 = sphi 0, %s74
      %s94 = sphi 0, %s96
      %s97 = sphi 0, %s94
      %s98 = sphi 0, %s97
      %s114 = sphi 0, %s98
    $region4: #{tpu_custom_call.1} parent=1 // loop_header_branch
      %19 = sbr.rel (%p17) target = $region8
    $region5: #{tpu_custom_call.1} parent=1 // loop_body
      %s21 = ssub.s32 %s16, 1
      %s22 = ssub.s32 %s16, 2
      %s23 = sadd.s32 %s16, 1
      %s24 = ssub.s32 %s16, %s23
      %p25 = scmp.eq.s32.totalorder %s24, 0
      %s27 = sadd.s32 %s26, 1
      %s28 = scalar_select %p25, %s26, %s27
      %p31 = pneg %p25
      %p32 = scmp.eq.s32.totalorder %s16, 1
      %p33 = por %p31, %p32
      %p34 = scmp.ne.s32.totalorder %s26, %s29
      %p35 = scmp.eq.s32.totalorder %s16, 0
      %p36 = por %p34, %p35
      %p37 = scmp.ne.s32.totalorder %s26, %s29
      %p38 = scmp.eq.s32.totalorder %s21, 1
      %p39 = por %p37, %p38
      %p40 = scmp.ne.s32.totalorder %s29, %s30
      %p41 = scmp.eq.s32.totalorder %s21, 0
      %p42 = por %p40, %p41
      %p43 = scmp.ne.s32.totalorder %s29, %s30
      %p44 = scmp.eq.s32.totalorder %s22, 1
      %p45 = por %p43, %p44
      %p47 = scmp.ne.s32.totalorder %s30, %s46
      %p48 = scmp.eq.s32.totalorder %s22, 0
      %p49 = por %p47, %p48
      %s51 = sadd.s32 %s50, 1
      %p54 = scmp.eq.s32.totalorder %s16, 1
      %p55 = scmp.ne.s32.totalorder %s50, %s52
      %p56 = scmp.eq.s32.totalorder %s16, 0
      %p57 = por %p55, %p56
      %p58 = scmp.ne.s32.totalorder %s50, %s52
      %p59 = scmp.eq.s32.totalorder %s21, 1
      %p60 = por %p58, %p59
      %p61 = scmp.ne.s32.totalorder %s52, %s53
      %p62 = scmp.eq.s32.totalorder %s21, 0
      %p63 = por %p61, %p62
      %p64 = scmp.ne.s32.totalorder %s52, %s53
      %p65 = scmp.eq.s32.totalorder %s22, 1
      %p66 = por %p64, %p65
      %p68 = scmp.ne.s32.totalorder %s53, %s67
      %p69 = scmp.eq.s32.totalorder %s22, 0
      %p70 = por %p68, %p69
      %s72 = sadd.s32 %s71, 1
      %p75 = scmp.eq.s32.totalorder %s16, 1
      %p76 = scmp.ne.s32.totalorder %s71, %s73
      %p77 = scmp.eq.s32.totalorder %s16, 0
      %p78 = por %p76, %p77
      %p79 = scmp.ne.s32.totalorder %s71, %s73
      %p80 = scmp.eq.s32.totalorder %s21, 1
      %p81 = por %p79, %p80
      %p82 = scmp.ne.s32.totalorder %s73, %s74
      %p83 = scmp.eq.s32.totalorder %s21, 0
      %p84 = por %p82, %p83
      %p85 = scmp.ne.s32.totalorder %s73, %s74
      %p86 = scmp.eq.s32.totalorder %s22, 1
      %p87 = por %p85, %p86
      %p89 = scmp.ne.s32.totalorder %s74, %s88
      %p90 = scmp.eq.s32.totalorder %s22, 0
      %p91 = por %p89, %p90
      %s92 = ssub.s32 %s16, %s23
      %p93 = scmp.eq.s32.totalorder %s92, 0
      %s95 = sadd.s32 %s94, 1
      %s96 = scalar_select %p93, %s94, %s95
      %p99 = pneg %p93
      %p100 = scmp.eq.s32.totalorder %s16, 1
      %p101 = por %p99, %p100
      %p102 = scmp.ne.s32.totalorder %s94, %s97
      %p103 = scmp.eq.s32.totalorder %s16, 0
      %p104 = por %p102, %p103
      %p105 = scmp.ne.s32.totalorder %s94, %s97
      %p106 = scmp.eq.s32.totalorder %s21, 1
      %p107 = por %p105, %p106
      %p108 = scmp.ne.s32.totalorder %s97, %s98
      %p109 = scmp.eq.s32.totalorder %s21, 0
      %p110 = por %p108, %p109
      %p111 = scmp.ne.s32.totalorder %s97, %s98
      %p112 = scmp.eq.s32.totalorder %s22, 1
      %p113 = por %p111, %p112
      %p115 = scmp.ne.s32.totalorder %s98, %s114
      %p116 = scmp.eq.s32.totalorder %s22, 0
      %p117 = por %p115, %p116
      %p118 = scmp.le.s32.totalorder 1, %s16
      %p119 = scmp.lt.s32.totalorder %s16, 3
      %p120 = pnand %p118, %p119
      %p121 = pneg %p120
      // Predicated region
      $region9: #{tpu_custom_call.1} parent=5 // pred_check
        _
      $region10: #{tpu_custom_call.1} parent=5 // pred_check_branch
        %123 = sbr.rel (%p120) target = $region12
      $region11: #{tpu_custom_call.1} parent=5 // pred_region
        %s124 = ssub.s32 %s16, 1
        // Predicated region
        $region13: #{tpu_custom_call.1} parent=11 // pred_check
          %p125 = pneg %p63
        $region14: #{tpu_custom_call.1} parent=11 // pred_check_branch
          %127 = sbr.rel (%p125) target = $region16
        $region15: #{tpu_custom_call.1} parent=11 // pred_region
          %s129 = ssub.s32 512, 512
          %130 = vsyncadd [#allocation6], %s129
          %s131 = sshll.u32 [#allocation5], 4
          %s132 = int_to_ptr.vmem [resolvable:$true] %s131
          %137 = dma.hbm_to_vmem [thread:$0]  %s1, 512, %s132, [#allocation6], 128, 128, 8
        $region16: #{tpu_custom_call.1} parent=11 // pred_fallthru
          _
        // Predicated region
        $region17: #{tpu_custom_call.1} parent=11 // pred_check
          %p138 = pneg %p84
        $region18: #{tpu_custom_call.1} parent=11 // pred_check_branch
          %140 = sbr.rel (%p138) target = $region20
        $region19: #{tpu_custom_call.1} parent=11 // pred_region
          _
        $region20: #{tpu_custom_call.1} parent=11 // pred_fallthru
          _
      $region12: #{tpu_custom_call.1} parent=5 // pred_fallthru
        _
      %p141 = scmp.lt.s32.totalorder %s16, 2
      // Predicated region
      $region21: #{tpu_custom_call.1} parent=5 // pred_check
        %p142 = pneg %p141
      $region22: #{tpu_custom_call.1} parent=5 // pred_check_branch
        %144 = sbr.rel (%p142) target = $region24
      $region23: #{tpu_custom_call.1} parent=5 // pred_region
        // Predicated region
        $region25: #{tpu_custom_call.1} parent=23 // pred_check
          %p145 = pneg %p36
        $region26: #{tpu_custom_call.1} parent=23 // pred_check_branch
          %147 = sbr.rel (%p145) target = $region28
        $region27: #{tpu_custom_call.1} parent=23 // pred_region
          %s148 = sand.u32 %s26, 1
          %s149 = scalar_lea.sflag [#allocation3], %s148
          %s150 = sand.u32 %s26, 1
          %s151 = smul.addr %s150, 8
          %s152 = scalar_lea.vmem [#allocation2], %s151
          %s154 = ssub.s32 128, 128
          %155 = vsyncadd %s149, %s154
          %s156 = smul.addr %s16, 128
          %s157 = scalar_lea.hbm %s0, %s156
          %s159 = sshll.u32 %s152, 4
          %s160 = int_to_ptr.vmem [resolvable:$true] %s159
          %162 = dma.hbm_to_vmem [thread:$0]  %s157, 128, %s160, %s149
        $region28: #{tpu_custom_call.1} parent=23 // pred_fallthru
          _
      $region24: #{tpu_custom_call.1} parent=5 // pred_fallthru
        _
      %p163 = scmp.le.s32.totalorder 1, %s16
      %p164 = scmp.lt.s32.totalorder %s16, 3
      %p165 = pnand %p163, %p164
      %p166 = pneg %p165
      // Predicated region
      $region29: #{tpu_custom_call.1} parent=5 // pred_check
        _
      $region30: #{tpu_custom_call.1} parent=5 // pred_check_branch
        %168 = sbr.rel (%p165) target = $region32
      $region31: #{tpu_custom_call.1} parent=5 // pred_region
        %s169 = ssub.s32 %s16, 1
        %s170 = sand.u32 %s29, 1
        %s171 = scalar_lea.sflag [#allocation3], %s170
        %s172 = sand.u32 %s29, 1
        %s173 = smul.addr %s172, 8
        %s174 = scalar_lea.vmem [#allocation2], %s173
        // Predicated region
        $region33: #{tpu_custom_call.1} parent=31 // pred_check
          %p175 = pneg %p42
        $region34: #{tpu_custom_call.1} parent=31 // pred_check_branch
          %177 = sbr.rel (%p175) target = $region36
        $region35: #{tpu_custom_call.1} parent=31 // pred_region
          %178 = dma.done %s171, 128
        $region36: #{tpu_custom_call.1} parent=31 // pred_fallthru
          _
        // Predicated region
        $region37: #{tpu_custom_call.1} parent=31 // pred_check
          %p179 = pneg %p63
        $region38: #{tpu_custom_call.1} parent=31 // pred_check_branch
          %181 = sbr.rel (%p179) target = $region40
        $region39: #{tpu_custom_call.1} parent=31 // pred_region
          %182 = dma.done [#allocation6], 512
        $region40: #{tpu_custom_call.1} parent=31 // pred_fallthru
          _
        %s183 = sand.u32 %s29, 1
        %s184 = scalar_lea.sflag [#allocation3], %s183
        %s185 = sand.u32 %s29, 1
        %s186 = smul.addr %s185, 8
        %s187 = scalar_lea.vmem [#allocation2], %s186
        %p188 = pneg %p42
        %p189 = pneg %p39
        %p190 = pneg %p63
        %p191 = pneg %p60
        %p192 = pneg %p84
        %p193 = pneg %p81
        %p194 = pneg %p110
        %p195 = pneg %p107
        %s196 = sand.u32 %s97, 1
        %s197 = scalar_lea.sflag [#allocation4], %s196
        %s198 = sand.u32 %s97, 1
        %s199 = smul.addr %s198, 8
        %s200 = scalar_lea.vmem [#allocation7], %s199
        %v201 = vld [vmem:[%s174] sm:$0xff]
        %v202 = vld [vmem:[#allocation5] sm:$0xff]
        %v203 = vld [vmem:[#allocation5 + $0x8] sm:$0xff]
        %v204 = vld [vmem:[#allocation5 + $0x10] sm:$0xff]
        %v205 = vld [vmem:[#allocation5 + $0x18] sm:$0xff]
        %v206 = vld [vmem:[%s2] sm:$0x1]
        %v208 = vlaneseq
        %v209 = vshrl.u32 %v208, 7
        %v210 = vsub.s32 0, %v209
        %v211 = vrot.slane %v206, %v210
        %vm213 = vcmask 261120
        %v215 = vsel %vm213, %v201, 0
        %217 = vmatprep.subr.mxu0 0.0
        %218 = vmatpush1.msra.mxu0 %v202
        %219 = vmatprep.subr.mxu0 0.0
        %220 = vmatpush1.msra.mxu0 %v203
        %221 = vmatprep.subr.mxu0 0.0
        %222 = vmatpush1.msra.mxu0 %v204
        %223 = vmatprep.subr.mxu0 0.0
        %224 = vmatpush1.msra.mxu0 %v205
        %225 = vmatprep.subr.mxu0 0.0
        %226 = vmatpush1.msra.mxu0 0.0
        %227 = vmatprep.subr.mxu0 0.0
        %228 = vmatpush1.msra.mxu0 0.0
        %229 = vmatprep.subr.mxu0 0.0
        %230 = vmatpush1.msra.mxu0 0.0
        %231 = vmatprep.subr.mxu0 0.0
        %232 = vmatpush1.msra.mxu0 0.0
        %233 = vmatprep.subr.mxu0 0.0
        %234 = vmatpush1.msra.mxu0 0.0
        %235 = vmatprep.subr.mxu0 0.0
        %236 = vmatpush1.msra.mxu0 0.0
        %237 = vmatprep.subr.mxu0 0.0
        %238 = vmatpush1.msra.mxu0 0.0
        %239 = vmatprep.subr.mxu0 0.0
        %240 = vmatpush1.msra.mxu0 0.0
        %241 = vmatprep.subr.mxu0 0.0
        %242 = vmatpush1.msra.mxu0 0.0
        %243 = vmatprep.subr.mxu0 0.0
        %244 = vmatpush1.msra.mxu0 0.0
        %245 = vmatprep.subr.mxu0 0.0
        %246 = vmatpush1.msra.mxu0 0.0
        %247 = vmatprep.subr.mxu0 0.0
        %248 = vmatpush1.msra.mxu0 0.0
        %249 = vmatprep.subr.mxu0 0.0
        %250 = vmatpush1.msra.mxu0 0.0
        %251 = vmatprep.subr.mxu0 0.0
        %252 = vmatpush1.msra.mxu0 0.0
        %253 = vmatprep.subr.mxu0 0.0
        %254 = vmatpush1.msra.mxu0 0.0
        %255 = vmatprep.subr.mxu0 0.0
        %256 = vmatpush1.msra.mxu0 0.0
        %257 = vmatprep.subr.mxu0 0.0
        %258 = vmatpush1.msra.mxu0 0.0
        %259 = vmatprep.subr.mxu0 0.0
        %260 = vmatpush1.msra.mxu0 0.0
        %261 = vmatprep.subr.mxu0 0.0
        %262 = vmatpush1.msra.mxu0 0.0
        %263 = vmatprep.subr.mxu0 0.0
        %264 = vmatpush1.msra.mxu0 0.0
        %265 = vmatprep.subr.mxu0 0.0
        %266 = vmatpush1.msra.mxu0 0.0
        %267 = vmatprep.subr.mxu0 0.0
        %268 = vmatpush1.msra.mxu0 0.0
        %269 = vmatprep.subr.mxu0 0.0
        %270 = vmatpush1.msra.mxu0 0.0
        %271 = vmatprep.subr.mxu0 0.0
        %272 = vmatpush1.msra.mxu0 0.0
        %273 = vmatprep.subr.mxu0 0.0
        %274 = vmatpush1.msra.mxu0 0.0
        %275 = vmatprep.subr.mxu0 0.0
        %276 = vmatpush1.msra.mxu0 0.0
        %277 = vmatprep.subr.mxu0 0.0
        %278 = vmatpush1.msra.mxu0 0.0
        %279 = vmatprep.subr.mxu0 0.0
        %280 = vmatpush1.msra.mxu0 0.0
        %281 = vmatprep.mubr.f32.mxu0 0.0
        %282 = vmatmul.mubr.f32.gmra.mrb[0].mxu0 %v215
        %v283 = vpop.f32.mrb[0].mxu0
        %v284 = vadd.f32 %v211, %v283
        %v285 = vpop.f32.mrb[0].mxu0
        %286 = vdwg.mxu0
        %v287 = vmin.f32 %v284, 20.0
        %v288 = vmul.f32 %v287, 1.442695
        %v289 = vpow.pop %v288
        %v290 = vadd.f32 %v289, 2.0
        %v291 = vmul.f32 %v289, %v290
        %v292 = vadd.f32 %v291, 2.0
        %v293 = vrcp.pop %v292
        %v294 = vmul.f32 %v291, %v293
        %v295 = vmul.f32 %v284, %v294
        %296 = vst.msk [vmem:[%s200] sm:$0xff] %vm213, %v295
        %s297 = sand.u32 %s97, 1
        %s298 = scalar_lea.sflag [#allocation4], %s297
        %s299 = sand.u32 %s97, 1
        %s300 = smul.addr %s299, 8
        %s301 = scalar_lea.vmem [#allocation7], %s300
        // Predicated region
        $region41: #{tpu_custom_call.1} parent=31 // pred_check
          %p302 = pneg %p107
        $region42: #{tpu_custom_call.1} parent=31 // pred_check_branch
          %304 = sbr.rel (%p302) target = $region44
        $region43: #{tpu_custom_call.1} parent=31 // pred_region
          %s306 = ssub.s32 128, 128
          %307 = vsyncadd %s298, %s306
          %s308 = smul.addr %s21, 128
          %s309 = scalar_lea.hbm %s3, %s308
          %s311 = sshll.u32 %s301, 4
          %s312 = int_to_ptr.vmem [resolvable:$true] %s311
          %314 = dma.vmem_to_hbm [thread:$0]  %s312, 128, %s309, %s298
        $region44: #{tpu_custom_call.1} parent=31 // pred_fallthru
          _
      $region32: #{tpu_custom_call.1} parent=5 // pred_fallthru
        _
      %p315 = scmp.le.s32.totalorder 2, %s16
      // Predicated region
      $region45: #{tpu_custom_call.1} parent=5 // pred_check
        %p316 = pneg %p315
      $region46: #{tpu_custom_call.1} parent=5 // pred_check_branch
        %318 = sbr.rel (%p316) target = $region48
      $region47: #{tpu_custom_call.1} parent=5 // pred_region
        %s319 = ssub.s32 %s16, 2
        // Predicated region
        $region49: #{tpu_custom_call.1} parent=47 // pred_check
          %p320 = pneg %p113
        $region50: #{tpu_custom_call.1} parent=47 // pred_check_branch
          %322 = sbr.rel (%p320) target = $region52
        $region51: #{tpu_custom_call.1} parent=47 // pred_region
          %s323 = sand.u32 %s98, 1
          %s324 = scalar_lea.sflag [#allocation4], %s323
          %s325 = sand.u32 %s98, 1
          %s326 = smul.addr %s325, 8
          %s327 = scalar_lea.vmem [#allocation7], %s326
          %328 = dma.done %s324, 128
        $region52: #{tpu_custom_call.1} parent=47 // pred_fallthru
          _
      $region48: #{tpu_custom_call.1} parent=5 // pred_fallthru
        _
    $region6: #{tpu_custom_call.1} parent=1 // loop_footer
      %s20 = sadd.s32 1, %s16
    $region7: #{tpu_custom_call.1} parent=1 // loop_footer_branch
      %15 = sbr.rel target = $region3
    $region8: #{tpu_custom_call.1} parent=1 // loop_exit
      _
    %329 = vsyncpa [#allocation3], 1
    %s330 = scalar_lea.sflag [#allocation3], 1
    %331 = vsyncpa %s330, 1
    %332 = vsyncpa [#allocation6], 1
    %333 = vsyncpa [#allocation4], 1
    %s334 = scalar_lea.sflag [#allocation4], 1
    %335 = vsyncpa %s334, 1

</llo_original>
